<compile_context>
chip_gen: v7x
topology: tpu7x:2x2x1
jax: 0.10.0
libtpu: 0.0.40
codegen_flags: <defaults>
</compile_context>

<pallas_src>
import jax
import jax.numpy as jnp
from jax.experimental import pallas as pl
from jax.experimental.pallas import tpu as pltpu


def _round_up(x: int, m: int) -> int:
    return ((x + m - 1) // m) * m


def _make_interp_kernel(exp_dtype):
    def kernel(gt_ref, yc_ref, b_ref, zt_ref, out_ref):
        # gt : (D, Cp)   = (W + W^T) @ z_context^T   (grid-invariant)
        # yc : (Cp, Y)   = y_context (C padded rows are zero)
        # b  : (1, Cp)   = diag(zc W zc^T); padded cols = +BIG -> zero weight
        # zt : (TQ, D)   tile of target latents
        # scores: one MXU matmul per tile, f32 accumulation
        s = jnp.dot(zt_ref[...], gt_ref[...],
                    preferred_element_type=jnp.float32) - b_ref[...]   # (TQ, Cp)
        m = jnp.max(s, axis=-1, keepdims=True)        # XLU row-max (stability)
        p = jnp.exp((s - m).astype(exp_dtype))        # EUP exp (bf16 on v6e/v7x opt)
        # denominator as an XLU row-sum (keeps second matmul lane-dense in Y)
        den = jnp.sum(p.astype(jnp.float32), axis=-1, keepdims=True)   # (TQ, 1)
        num = jnp.dot(p, yc_ref[...], preferred_element_type=jnp.float32)
        # exact divide (approx reciprocal was the accuracy failure before)
        out_ref[...] = (num / den).astype(out_ref.dtype)
    return kernel


def interpolator_forward(z_context, y_context, z_target, W, *,
                         tq=1024, compute_dtype=jnp.float32, lane_pad=128):
    C, D = z_context.shape
    Cy, Y = y_context.shape
    T, Dt = z_target.shape
    assert Cy == C and Dt == D and W.shape == (D, D)

    # ---- grid-invariant context precompute (hoisted out of the kernel) ----
    zc32 = z_context.astype(jnp.float32)
    w32 = W.astype(jnp.float32)
    gt = (w32 + w32.T) @ zc32.T                         # (D, C)
    b = jnp.sum((zc32 @ w32) * zc32, axis=-1)           # (C,)
    yc = y_context.astype(compute_dtype)                # (C, Y)

    # ---- pad C to a lane multiple; padded columns get zero softmax weight ----
    Cp = max(lane_pad, _round_up(C, lane_pad))
    if Cp != C:
        gt = jnp.pad(gt, ((0, 0), (0, Cp - C)))
        b = jnp.pad(b, (0, Cp - C), constant_values=jnp.float32(1e30))
        yc = jnp.pad(yc, ((0, Cp - C), (0, 0)))
    gt = gt.astype(compute_dtype)
    b = b[None, :]                                      # (1, Cp) lane-major

    # ---- target tiling: multiple-of-8 tiles, >=2 grid steps when T allows ----
    tq_eff = min(tq, max(8, _round_up((T + 1) // 2, 8)))
    t_pad = _round_up(T, tq_eff)
    zt = z_target.astype(compute_dtype)
    if t_pad != T:
        zt = jnp.pad(zt, ((0, t_pad - T), (0, 0)))      # padded rows discarded
    grid = (t_pad // tq_eff,)

    # ---- explicit VMEM budget (sized so v7x's 64 MiB is respected) ----
    itm = jnp.dtype(compute_dtype).itemsize
    out_itm = jnp.dtype(y_context.dtype).itemsize
    vmem_needed = (2 * D * Cp * itm          # gt  (double-buffered resident)
                   + 2 * Cp * Y * itm        # yc
                   + 2 * 8 * Cp * 4          # b (sublane-padded)
                   + 2 * tq_eff * D * itm    # zt stream
                   + 2 * tq_eff * Y * out_itm)
    vmem_limit_bytes = int(min(100 * 2**20, max(16 * 2**20, 2 * vmem_needed)))

    cost = pl.CostEstimate(
        flops=2 * t_pad * D * Cp + 2 * t_pad * Cp * Y,
        transcendentals=t_pad * Cp,
        bytes_accessed=4 * (D * Cp + Cp * Y + Cp) + t_pad * (D + Y) * 4,
    )

    out = pl.pallas_call(
        _make_interp_kernel(compute_dtype),
        out_shape=jax.ShapeDtypeStruct((t_pad, Y), y_context.dtype),
        grid_spec=pltpu.PrefetchScalarGridSpec(
            num_scalar_prefetch=0,
            grid=grid,
            in_specs=[
                pl.BlockSpec((D, Cp), lambda i: (0, 0)),        # Gt   (resident)
                pl.BlockSpec((Cp, Y), lambda i: (0, 0)),        # yc   (resident)
                pl.BlockSpec((1, Cp), lambda i: (0, 0)),        # b    (resident)
                pl.BlockSpec((tq_eff, D), lambda i: (i, 0)),    # z_target (tiled)
            ],
            out_specs=pl.BlockSpec((tq_eff, Y), lambda i: (i, 0)),
        ),
        compiler_params=pltpu.CompilerParams(
            dimension_semantics=("parallel",),
            vmem_limit_bytes=vmem_limit_bytes),
        cost_estimate=cost,
    )(gt, yc, b, zt)
    return out[:T]


def _reference(z_context, y_context, z_target, W):
    # Direct translation of the PyTorch forward (T > 1, so squeeze(0) is a no-op).
    z_diff = z_target[:, None, :] - z_context[None, :, :]           # (T, C, D)
    thetas = jnp.exp(-jnp.sum(jnp.einsum("tcd,de->tce", z_diff, W) * z_diff, -1))
    return thetas @ y_context / jnp.sum(thetas, axis=-1, keepdims=True)


if __name__ == "__main__":
    C, D, T, Y = 8, 32, 16, 8   # context pts, z_dim (input_dim), target pts, y_dim

    key = jax.random.PRNGKey(0)
    k1, k2, k3 = jax.random.split(key, 3)
    z_context = jax.random.normal(k1, (C, D), dtype=jnp.float32)
    y_context = jax.random.normal(k2, (C, Y), dtype=jnp.float32)
    z_target = jax.random.normal(k3, (T, D), dtype=jnp.float32)
    W = jnp.eye(D, dtype=jnp.float32)   # self.W.data = torch.eye(input_dim)

    out = interpolator_forward(z_context, y_context, z_target, W)
    out = jax.block_until_ready(out)

    ref = _reference(z_context, y_context, z_target, W)
    assert out.shape == (T, Y)
    assert jnp.allclose(out, ref, rtol=1e-3, atol=1e-4), "mismatch vs reference"

    print("KERNEL_OK")
</pallas_src>

<mosaic_0001>
module attributes {stable_mosaic.version = 11 : i64} {
  func.func @kernel(%arg0: i32, %arg1: memref<32x128xf32, #tpu.memory_space<vmem>>, %arg2: memref<128x8xf32, #tpu.memory_space<vmem>>, %arg3: memref<1x128xf32, #tpu.memory_space<vmem>>, %arg4: memref<8x32xf32, #tpu.memory_space<vmem>>, %arg5: memref<8x8xf32, #tpu.memory_space<vmem>>) attributes {dimension_semantics = [#tpu.dimension_semantics<parallel>], iteration_bounds = array<i64: 2>, scalar_prefetch = 0 : i64, scratch_operands = 0 : i64, tpu.core_type = #tpu.core_type<tc>, window_params = [{pipeline_mode = #tpu.pipeline_mode<synchronous>, transform_indices = @transform_0, window_bounds = array<i64: 32, 128>}, {pipeline_mode = #tpu.pipeline_mode<synchronous>, transform_indices = @transform_1, window_bounds = array<i64: 128, 8>}, {pipeline_mode = #tpu.pipeline_mode<synchronous>, transform_indices = @transform_2, window_bounds = array<i64: 1, 128>}, {transform_indices = @transform_3, window_bounds = array<i64: 8, 32>}, {transform_indices = @transform_4, window_bounds = array<i64: 8, 8>}]} {
    %c0 = arith.constant 0 : index
    %c0_0 = arith.constant 0 : index
    %0 = vector.load %arg4[%c0, %c0_0] : memref<8x32xf32, #tpu.memory_space<vmem>>, vector<8x32xf32>
    %c0_1 = arith.constant 0 : index
    %c0_2 = arith.constant 0 : index
    %1 = vector.load %arg1[%c0_1, %c0_2] : memref<32x128xf32, #tpu.memory_space<vmem>>, vector<32x128xf32>
    %cst = arith.constant dense<0.000000e+00> : vector<8x128xf32>
    %2 = tpu.matmul %0, %1, %cst {dimension_numbers = #tpu.dot_dimension_numbers<[1], [0], [0], [1], [0, 0, 1, 1], [], []>} : vector<8x32xf32>, vector<32x128xf32>, vector<8x128xf32> -> vector<8x128xf32>
    %c0_3 = arith.constant 0 : index
    %c0_4 = arith.constant 0 : index
    %3 = vector.load %arg3[%c0_3, %c0_4] : memref<1x128xf32, #tpu.memory_space<vmem>>, vector<1x128xf32>
    %4 = vector.broadcast %3 : vector<1x128xf32> to vector<8x128xf32>
    %5 = arith.subf %2, %4 : vector<8x128xf32>
    %cst_5 = arith.constant dense<0xFF800000> : vector<8xf32>
    %6 = vector.multi_reduction <maximumf>, %5, %cst_5 [1] : vector<8x128xf32> to vector<8xf32>
    %7 = vector.shape_cast %6 : vector<8xf32> to vector<8x1xf32>
    %8 = vector.broadcast %7 : vector<8x1xf32> to vector<8x128xf32>
    %9 = arith.subf %5, %8 : vector<8x128xf32>
    %10 = math.exp %9 : vector<8x128xf32>
    %cst_6 = arith.constant dense<0.000000e+00> : vector<8xf32>
    %11 = vector.multi_reduction <add>, %10, %cst_6 [1] : vector<8x128xf32> to vector<8xf32>
    %12 = vector.shape_cast %11 : vector<8xf32> to vector<8x1xf32>
    %c0_7 = arith.constant 0 : index
    %c0_8 = arith.constant 0 : index
    %13 = vector.load %arg2[%c0_7, %c0_8] : memref<128x8xf32, #tpu.memory_space<vmem>>, vector<128x8xf32>
    %cst_9 = arith.constant dense<0.000000e+00> : vector<8x8xf32>
    %14 = tpu.matmul %10, %13, %cst_9 {dimension_numbers = #tpu.dot_dimension_numbers<[1], [0], [0], [1], [0, 0, 1, 1], [], []>} : vector<8x128xf32>, vector<128x8xf32>, vector<8x8xf32> -> vector<8x8xf32>
    %15 = vector.broadcast %12 : vector<8x1xf32> to vector<8x8xf32>
    %16 = arith.divf %14, %15 : vector<8x8xf32>
    %c0_10 = arith.constant 0 : index
    %c0_11 = arith.constant 0 : index
    %17 = vector.load %arg5[%c0_10, %c0_11] : memref<8x8xf32, #tpu.memory_space<vmem>>, vector<8x8xf32>
    tpu.vector_store %arg5[%c0_10, %c0_11], %16 {strides = array<i32>} : memref<8x8xf32, #tpu.memory_space<vmem>>, vector<8x8xf32>,
    return
  }
  func.func @transform_0(%arg0: i32) -> (i32, i32) {
    %c0_i32 = arith.constant 0 : i32
    %c0_i32_0 = arith.constant 0 : i32
    %c0_i32_1 = arith.constant 0 : i32
    return %c0_i32, %c0_i32_0 : i32, i32
  }
  func.func @transform_1(%arg0: i32) -> (i32, i32) {
    %c0_i32 = arith.constant 0 : i32
    %c0_i32_0 = arith.constant 0 : i32
    %c0_i32_1 = arith.constant 0 : i32
    return %c0_i32, %c0_i32_0 : i32, i32
  }
  func.func @transform_2(%arg0: i32) -> (i32, i32) {
    %c0_i32 = arith.constant 0 : i32
    %c0_i32_0 = arith.constant 0 : i32
    %c0_i32_1 = arith.constant 0 : i32
    return %c0_i32, %c0_i32_0 : i32, i32
  }
  func.func @transform_3(%arg0: i32) -> (i32, i32) {
    %c0_i32 = arith.constant 0 : i32
    %c0_i32_0 = arith.constant 0 : i32
    return %arg0, %c0_i32 : i32, i32
  }
  func.func @transform_4(%arg0: i32) -> (i32, i32) {
    %c0_i32 = arith.constant 0 : i32
    %c0_i32_0 = arith.constant 0 : i32
    return %arg0, %c0_i32 : i32, i32
  }
}

</mosaic_0001>

<llo_original>
// kernel: tpu_custom_call.1
$region0: #{tpu_custom_call.1}
  #allocation0 [shape = 'u32[]', space=smem, size = 0x4, offset = 0x4, fixed_abs, tag = 'smem constant byte address 0x4 - core index']
  #allocation1 [shape = 'u32[144,128]{1,0:T(1,128)}', space=vmem, size = 0x12000, scoped, tag = 'internal scratch']
  %s0 = inlined_call_operand.vmem [shape: f32[32,128], index: 0, kind: input, shape index: {}]
  %s1 = inlined_call_operand.vmem [shape: f32[128,8], index: 1, kind: input, shape index: {}]
  %s2 = inlined_call_operand.vmem [shape: f32[1,128], index: 2, kind: input, shape index: {}]
  %s3 = inlined_call_operand.vmem [shape: f32[16,32], index: 3, kind: input, shape index: {}]
  %s4 = inlined_call_operand.vmem [shape: f32[16,8], index: 4, kind: output, shape index: {}]
  %s5 = sld [smem:[#allocation0]]
  $region49: #{tpu_custom_call.1} parent=0
    _
  %s7 = ssub.s32 1, %s5
  %s8 = scalar_select 0, %s7, %s5
  loop: start=0, step=1, limit=4
  $region2: #{tpu_custom_call.1} parent=0 // loop_pre_header
    _
  $region3: #{tpu_custom_call.1} parent=0 // loop_header
    %s10 = sphi 0, %s14
    %p11 = scmp.ge.s32.totalorder %s10, 4
    %s18 = sphi 0, %s18
    %s20 = sphi 0, %s18
    %s21 = sphi 0, %s20
    %s35 = sphi 0, %s21
    %s39 = sphi 0, %s39
    %s41 = sphi 0, %s39
    %s42 = sphi 0, %s41
    %s56 = sphi 0, %s42
    %s60 = sphi 0, %s60
    %s62 = sphi 0, %s60
    %s63 = sphi 0, %s62
    %s77 = sphi 0, %s63
    %s83 = sphi 0, %s85
    %s86 = sphi 0, %s83
    %s87 = sphi 0, %s86
    %s103 = sphi 0, %s87
    %s109 = sphi 0, %s111
    %s112 = sphi 0, %s109
    %s113 = sphi 0, %s112
    %s129 = sphi 0, %s113
  $region4: #{tpu_custom_call.1} parent=0 // loop_header_branch
    %13 = sbr.rel (%p11) target = $region8
  $region5: #{tpu_custom_call.1} parent=0 // loop_body
    %s15 = ssub.s32 %s10, 1
    %s16 = ssub.s32 %s10, 2
    %s17 = sadd.s32 %s10, 1
    %s19 = sadd.s32 %s18, 1
    %p22 = scmp.eq.s32.totalorder %s10, 1
    %p23 = scmp.ne.s32.totalorder %s18, %s20
    %p24 = scmp.eq.s32.totalorder %s10, 0
    %p25 = por %p23, %p24
    %p26 = scmp.ne.s32.totalorder %s18, %s20
    %p27 = scmp.eq.s32.totalorder %s15, 1
    %p28 = por %p26, %p27
    %p29 = scmp.ne.s32.totalorder %s20, %s21
    %p30 = scmp.eq.s32.totalorder %s15, 0
    %p31 = por %p29, %p30
    %p32 = scmp.ne.s32.totalorder %s20, %s21
    %p33 = scmp.eq.s32.totalorder %s16, 1
    %p34 = por %p32, %p33
    %p36 = scmp.ne.s32.totalorder %s21, %s35
    %p37 = scmp.eq.s32.totalorder %s16, 0
    %p38 = por %p36, %p37
    %s40 = sadd.s32 %s39, 1
    %p43 = scmp.eq.s32.totalorder %s10, 1
    %p44 = scmp.ne.s32.totalorder %s39, %s41
    %p45 = scmp.eq.s32.totalorder %s10, 0
    %p46 = por %p44, %p45
    %p47 = scmp.ne.s32.totalorder %s39, %s41
    %p48 = scmp.eq.s32.totalorder %s15, 1
    %p49 = por %p47, %p48
    %p50 = scmp.ne.s32.totalorder %s41, %s42
    %p51 = scmp.eq.s32.totalorder %s15, 0
    %p52 = por %p50, %p51
    %p53 = scmp.ne.s32.totalorder %s41, %s42
    %p54 = scmp.eq.s32.totalorder %s16, 1
    %p55 = por %p53, %p54
    %p57 = scmp.ne.s32.totalorder %s42, %s56
    %p58 = scmp.eq.s32.totalorder %s16, 0
    %p59 = por %p57, %p58
    %s61 = sadd.s32 %s60, 1
    %p64 = scmp.eq.s32.totalorder %s10, 1
    %p65 = scmp.ne.s32.totalorder %s60, %s62
    %p66 = scmp.eq.s32.totalorder %s10, 0
    %p67 = por %p65, %p66
    %p68 = scmp.ne.s32.totalorder %s60, %s62
    %p69 = scmp.eq.s32.totalorder %s15, 1
    %p70 = por %p68, %p69
    %p71 = scmp.ne.s32.totalorder %s62, %s63
    %p72 = scmp.eq.s32.totalorder %s15, 0
    %p73 = por %p71, %p72
    %p74 = scmp.ne.s32.totalorder %s62, %s63
    %p75 = scmp.eq.s32.totalorder %s16, 1
    %p76 = por %p74, %p75
    %p78 = scmp.ne.s32.totalorder %s63, %s77
    %p79 = scmp.eq.s32.totalorder %s16, 0
    %p80 = por %p78, %p79
    %s81 = ssub.s32 %s10, %s17
    %p82 = scmp.eq.s32.totalorder %s81, 0
    %s84 = sadd.s32 %s83, 1
    %s85 = scalar_select %p82, %s83, %s84
    %p88 = pneg %p82
    %p89 = scmp.eq.s32.totalorder %s10, 1
    %p90 = por %p88, %p89
    %p91 = scmp.ne.s32.totalorder %s83, %s86
    %p92 = scmp.eq.s32.totalorder %s10, 0
    %p93 = por %p91, %p92
    %p94 = scmp.ne.s32.totalorder %s83, %s86
    %p95 = scmp.eq.s32.totalorder %s15, 1
    %p96 = por %p94, %p95
    %p97 = scmp.ne.s32.totalorder %s86, %s87
    %p98 = scmp.eq.s32.totalorder %s15, 0
    %p99 = por %p97, %p98
    %p100 = scmp.ne.s32.totalorder %s86, %s87
    %p101 = scmp.eq.s32.totalorder %s16, 1
    %p102 = por %p100, %p101
    %p104 = scmp.ne.s32.totalorder %s87, %s103
    %p105 = scmp.eq.s32.totalorder %s16, 0
    %p106 = por %p104, %p105
    %s107 = ssub.s32 %s10, %s17
    %p108 = scmp.eq.s32.totalorder %s107, 0
    %s110 = sadd.s32 %s109, 1
    %s111 = scalar_select %p108, %s109, %s110
    %p114 = pneg %p108
    %p115 = scmp.eq.s32.totalorder %s10, 1
    %p116 = por %p114, %p115
    %p117 = scmp.ne.s32.totalorder %s109, %s112
    %p118 = scmp.eq.s32.totalorder %s10, 0
    %p119 = por %p117, %p118
    %p120 = scmp.ne.s32.totalorder %s109, %s112
    %p121 = scmp.eq.s32.totalorder %s15, 1
    %p122 = por %p120, %p121
    %p123 = scmp.ne.s32.totalorder %s112, %s113
    %p124 = scmp.eq.s32.totalorder %s15, 0
    %p125 = por %p123, %p124
    %p126 = scmp.ne.s32.totalorder %s112, %s113
    %p127 = scmp.eq.s32.totalorder %s16, 1
    %p128 = por %p126, %p127
    %p130 = scmp.ne.s32.totalorder %s113, %s129
    %p131 = scmp.eq.s32.totalorder %s16, 0
    %p132 = por %p130, %p131
    %p133 = scmp.le.s32.totalorder 1, %s10
    %p134 = scmp.lt.s32.totalorder %s10, 3
    %p135 = pnand %p133, %p134
    %p136 = pneg %p135
    // Predicated region
    $region9: #{tpu_custom_call.1} parent=5 // pred_check
      _
    $region10: #{tpu_custom_call.1} parent=5 // pred_check_branch
      %138 = sbr.rel (%p135) target = $region12
    $region11: #{tpu_custom_call.1} parent=5 // pred_region
      %s139 = ssub.s32 %s10, 1
      // Predicated region
      $region13: #{tpu_custom_call.1} parent=11 // pred_check
        %p140 = pneg %p31
      $region14: #{tpu_custom_call.1} parent=11 // pred_check_branch
        %142 = sbr.rel (%p140) target = $region16
      $region15: #{tpu_custom_call.1} parent=11 // pred_region
        _
      $region16: #{tpu_custom_call.1} parent=11 // pred_fallthru
        _
      // Predicated region
      $region17: #{tpu_custom_call.1} parent=11 // pred_check
        %p143 = pneg %p52
      $region18: #{tpu_custom_call.1} parent=11 // pred_check_branch
        %145 = sbr.rel (%p143) target = $region20
      $region19: #{tpu_custom_call.1} parent=11 // pred_region
        _
      $region20: #{tpu_custom_call.1} parent=11 // pred_fallthru
        _
      // Predicated region
      $region21: #{tpu_custom_call.1} parent=11 // pred_check
        %p146 = pneg %p73
      $region22: #{tpu_custom_call.1} parent=11 // pred_check_branch
        %148 = sbr.rel (%p146) target = $region24
      $region23: #{tpu_custom_call.1} parent=11 // pred_region
        _
      $region24: #{tpu_custom_call.1} parent=11 // pred_fallthru
        _
    $region12: #{tpu_custom_call.1} parent=5 // pred_fallthru
      _
    %p149 = scmp.lt.s32.totalorder %s10, 2
    // Predicated region
    $region25: #{tpu_custom_call.1} parent=5 // pred_check
      %p150 = pneg %p149
    $region26: #{tpu_custom_call.1} parent=5 // pred_check_branch
      %152 = sbr.rel (%p150) target = $region28
    $region27: #{tpu_custom_call.1} parent=5 // pred_region
      // Predicated region
      $region29: #{tpu_custom_call.1} parent=27 // pred_check
        %p153 = pneg %p93
      $region30: #{tpu_custom_call.1} parent=27 // pred_check_branch
        %155 = sbr.rel (%p153) target = $region32
      $region31: #{tpu_custom_call.1} parent=27 // pred_region
        %p156 = scmp.lt.s32.totalorder %s10, 1
        %s157 = scalar_select %p156, %s10, 1
        %s158 = smul.addr %s157, 8
        %s159 = scalar_lea.vmem %s3, %s158
      $region32: #{tpu_custom_call.1} parent=27 // pred_fallthru
        _
    $region28: #{tpu_custom_call.1} parent=5 // pred_fallthru
      _
    %p160 = scmp.le.s32.totalorder 1, %s10
    %p161 = scmp.lt.s32.totalorder %s10, 3
    %p162 = pnand %p160, %p161
    %p163 = pneg %p162
    // Predicated region
    $region33: #{tpu_custom_call.1} parent=5 // pred_check
      _
    $region34: #{tpu_custom_call.1} parent=5 // pred_check_branch
      %165 = sbr.rel (%p162) target = $region36
    $region35: #{tpu_custom_call.1} parent=5 // pred_region
      %s166 = ssub.s32 %s10, 1
      %p167 = pneg %p31
      %p168 = pneg %p28
      %p169 = pneg %p52
      %p170 = pneg %p49
      %p171 = pneg %p73
      %p172 = pneg %p70
      %p173 = scmp.lt.s32.totalorder %s15, 1
      %s174 = scalar_select %p173, %s15, 1
      %s175 = smul.addr %s174, 8
      %s176 = scalar_lea.vmem %s3, %s175
      %p177 = pneg %p99
      %p178 = pneg %p96
      %p179 = pneg %p125
      %p180 = pneg %p122
      %p181 = scmp.lt.s32.totalorder %s15, 1
      %s182 = scalar_select %p181, %s15, 1
      %s183 = smul.addr %s182, 8
      %s184 = scalar_lea.vmem %s4, %s183
      %p185 = scmp.lt.s32.totalorder %s15, 1
      %s186 = scalar_select %p185, %s15, 1
      %s187 = smul.addr %s186, 8
      %s188 = scalar_lea.vmem %s3, %s187
      %p189 = scmp.lt.s32.totalorder %s15, 1
      %s190 = scalar_select %p189, %s15, 1
      %s191 = smul.addr %s190, 8
      %s192 = scalar_lea.vmem %s4, %s191
      %v193 = vld [vmem:[%s188] sm:$0xff]
      %v194 = vld [vmem:[%s0] sm:$0xff]
      %v195 = vld [vmem:[%s0 + $0x8] sm:$0xff]
      %v196 = vld [vmem:[%s0 + $0x10] sm:$0xff]
      %v197 = vld [vmem:[%s0 + $0x18] sm:$0xff]
      %vm198 = vcmask 261120
      %v200 = vsel %vm198, %v193, 0
      %202 = vmatprep.subr.mxu0 0.0
      %203 = vmatpush1.msra.mxu0 %v194
      %204 = vmatprep.subr.mxu0 0.0
      %205 = vmatpush1.msra.mxu0 %v195
      %206 = vmatprep.subr.mxu0 0.0
      %207 = vmatpush1.msra.mxu0 %v196
      %208 = vmatprep.subr.mxu0 0.0
      %209 = vmatpush1.msra.mxu0 %v197
      %210 = vmatprep.subr.mxu0 0.0
      %211 = vmatpush1.msra.mxu0 0.0
      %212 = vmatprep.subr.mxu0 0.0
      %213 = vmatpush1.msra.mxu0 0.0
      %214 = vmatprep.subr.mxu0 0.0
      %215 = vmatpush1.msra.mxu0 0.0
      %216 = vmatprep.subr.mxu0 0.0
      %217 = vmatpush1.msra.mxu0 0.0
      %218 = vmatprep.subr.mxu0 0.0
      %219 = vmatpush1.msra.mxu0 0.0
      %220 = vmatprep.subr.mxu0 0.0
      %221 = vmatpush1.msra.mxu0 0.0
      %222 = vmatprep.subr.mxu0 0.0
      %223 = vmatpush1.msra.mxu0 0.0
      %224 = vmatprep.subr.mxu0 0.0
      %225 = vmatpush1.msra.mxu0 0.0
      %226 = vmatprep.subr.mxu0 0.0
      %227 = vmatpush1.msra.mxu0 0.0
      %228 = vmatprep.subr.mxu0 0.0
      %229 = vmatpush1.msra.mxu0 0.0
      %230 = vmatprep.subr.mxu0 0.0
      %231 = vmatpush1.msra.mxu0 0.0
      %232 = vmatprep.subr.mxu0 0.0
      %233 = vmatpush1.msra.mxu0 0.0
      %234 = vmatprep.subr.mxu0 0.0
      %235 = vmatpush1.msra.mxu0 0.0
      %236 = vmatprep.subr.mxu0 0.0
      %237 = vmatpush1.msra.mxu0 0.0
      %238 = vmatprep.subr.mxu0 0.0
      %239 = vmatpush1.msra.mxu0 0.0
      %240 = vmatprep.subr.mxu0 0.0
      %241 = vmatpush1.msra.mxu0 0.0
      %242 = vmatprep.subr.mxu0 0.0
      %243 = vmatpush1.msra.mxu0 0.0
      %244 = vmatprep.subr.mxu0 0.0
      %245 = vmatpush1.msra.mxu0 0.0
      %246 = vmatprep.subr.mxu0 0.0
      %247 = vmatpush1.msra.mxu0 0.0
      %248 = vmatprep.subr.mxu0 0.0
      %249 = vmatpush1.msra.mxu0 0.0
      %250 = vmatprep.subr.mxu0 0.0
      %251 = vmatpush1.msra.mxu0 0.0
      %252 = vmatprep.subr.mxu0 0.0
      %253 = vmatpush1.msra.mxu0 0.0
      %254 = vmatprep.subr.mxu0 0.0
      %255 = vmatpush1.msra.mxu0 0.0
      %256 = vmatprep.subr.mxu0 0.0
      %257 = vmatpush1.msra.mxu0 0.0
      %258 = vmatprep.subr.mxu0 0.0
      %259 = vmatpush1.msra.mxu0 0.0
      %260 = vmatprep.subr.mxu0 0.0
      %261 = vmatpush1.msra.mxu0 0.0
      %262 = vmatprep.subr.mxu0 0.0
      %263 = vmatpush1.msra.mxu0 0.0
      %264 = vmatprep.subr.mxu0 0.0
      %265 = vmatpush1.msra.mxu0 0.0
      %266 = vmatprep.mubr.f32.mxu0 0.0
      %267 = vmatmul.mubr.f32.gmra.mrb[0].mxu0 %v200
      %v268 = vpop.f32.mrb[0].mxu0
      %v269 = vadd.f32 0.0, %v268
      %v270 = vpop.f32.mrb[0].mxu0
      %271 = vdwg.mxu0
      %v272 = vld [vmem:[%s2] sm:$0x1]
      %v274 = vlaneseq
      %v275 = vshrl.u32 %v274, 7
      %v276 = vsub.s32 0, %v275
      %v277 = vrot.slane %v272, %v276
      %v279 = vsub.f32 %v269, %v277
      %280 = vmax.xlane.f32.xlu0 %v279
      %v281 = vpop.xlane.xlu0 %280
      %v282 = vsub.f32 %v279, %v281
      %v283 = vmul.f32 %v282, 1.442695
      %v284 = vpow.pop %v283
      %285 = vadd.xlane.f32.xlu0 %v284
      %v286 = vpop.xlane.xlu0 %285
      %v287 = vld [vmem:[%s1] sm:$0xff]
      %v288 = vld [vmem:[%s1 + $0x8] sm:$0xff]
      %v289 = vld [vmem:[%s1 + $0x10] sm:$0xff]
      %v290 = vld [vmem:[%s1 + $0x18] sm:$0xff]
      %v291 = vld [vmem:[%s1 + $0x20] sm:$0xff]
      %v292 = vld [vmem:[%s1 + $0x28] sm:$0xff]
      %v293 = vld [vmem:[%s1 + $0x30] sm:$0xff]
      %v294 = vld [vmem:[%s1 + $0x38] sm:$0xff]
      %v295 = vld [vmem:[%s1 + $0x40] sm:$0xff]
      %v296 = vld [vmem:[%s1 + $0x48] sm:$0xff]
      %v297 = vld [vmem:[%s1 + $0x50] sm:$0xff]
      %v298 = vld [vmem:[%s1 + $0x58] sm:$0xff]
      %v299 = vld [vmem:[%s1 + $0x60] sm:$0xff]
      %v300 = vld [vmem:[%s1 + $0x68] sm:$0xff]
      %v301 = vld [vmem:[%s1 + $0x70] sm:$0xff]
      %v302 = vld [vmem:[%s1 + $0x78] sm:$0xff]
      %303 = vmatprep.subr.mxu0 0.0
      %304 = vmatpush1.msra.mxu0 %v287
      %305 = vmatprep.subr.mxu0 0.0
      %306 = vmatpush1.msra.mxu0 %v288
      %307 = vmatprep.subr.mxu0 0.0
      %308 = vmatpush1.msra.mxu0 %v289
      %309 = vmatprep.subr.mxu0 0.0
      %310 = vmatpush1.msra.mxu0 %v290
      %311 = vmatprep.subr.mxu0 0.0
      %312 = vmatpush1.msra.mxu0 %v291
      %313 = vmatprep.subr.mxu0 0.0
      %314 = vmatpush1.msra.mxu0 %v292
      %315 = vmatprep.subr.mxu0 0.0
      %316 = vmatpush1.msra.mxu0 %v293
      %317 = vmatprep.subr.mxu0 0.0
      %318 = vmatpush1.msra.mxu0 %v294
      %319 = vmatprep.subr.mxu0 0.0
      %320 = vmatpush1.msra.mxu0 %v295
      %321 = vmatprep.subr.mxu0 0.0
      %322 = vmatpush1.msra.mxu0 %v296
      %323 = vmatprep.subr.mxu0 0.0
      %324 = vmatpush1.msra.mxu0 %v297
      %325 = vmatprep.subr.mxu0 0.0
      %326 = vmatpush1.msra.mxu0 %v298
      %327 = vmatprep.subr.mxu0 0.0
      %328 = vmatpush1.msra.mxu0 %v299
      %329 = vmatprep.subr.mxu0 0.0
      %330 = vmatpush1.msra.mxu0 %v300
      %331 = vmatprep.subr.mxu0 0.0
      %332 = vmatpush1.msra.mxu0 %v301
      %333 = vmatprep.subr.mxu0 0.0
      %334 = vmatpush1.msra.mxu0 %v302
      %335 = vmatprep.subr.mxu0 0.0
      %336 = vmatpush1.msra.mxu0 0.0
      %337 = vmatprep.subr.mxu0 0.0
      %338 = vmatpush1.msra.mxu0 0.0
      %339 = vmatprep.subr.mxu0 0.0
      %340 = vmatpush1.msra.mxu0 0.0
      %341 = vmatprep.subr.mxu0 0.0
      %342 = vmatpush1.msra.mxu0 0.0
      %343 = vmatprep.subr.mxu0 0.0
      %344 = vmatpush1.msra.mxu0 0.0
      %345 = vmatprep.subr.mxu0 0.0
      %346 = vmatpush1.msra.mxu0 0.0
      %347 = vmatprep.subr.mxu0 0.0
      %348 = vmatpush1.msra.mxu0 0.0
      %349 = vmatprep.subr.mxu0 0.0
      %350 = vmatpush1.msra.mxu0 0.0
      %351 = vmatprep.subr.mxu0 0.0
      %352 = vmatpush1.msra.mxu0 0.0
      %353 = vmatprep.subr.mxu0 0.0
      %354 = vmatpush1.msra.mxu0 0.0
      %355 = vmatprep.subr.mxu0 0.0
      %356 = vmatpush1.msra.mxu0 0.0
      %357 = vmatprep.subr.mxu0 0.0
      %358 = vmatpush1.msra.mxu0 0.0
      %359 = vmatprep.subr.mxu0 0.0
      %360 = vmatpush1.msra.mxu0 0.0
      %361 = vmatprep.subr.mxu0 0.0
      %362 = vmatpush1.msra.mxu0 0.0
      %363 = vmatprep.subr.mxu0 0.0
      %364 = vmatpush1.msra.mxu0 0.0
      %365 = vmatprep.subr.mxu0 0.0
      %366 = vmatpush1.msra.mxu0 0.0
      %367 = vmatprep.mubr.f32.mxu0 0.0
      %368 = vmatmul.mubr.f32.gmra.mrb[0].mxu0 %v284
      %v369 = vpop.f32.mrb[0].mxu0
      %v370 = vadd.f32 0.0, %v369
      %v371 = vpop.f32.mrb[0].mxu0
      %372 = vdwg.mxu0
      %v373 = vrcp.pop %v286
      %v374 = vmul.f32 %v370, %v373
      %vm375 = vcmask 64512
      %376 = vst.msk [vmem:[%s192] sm:$0xff] %vm375, %v374
      %p377 = scmp.lt.s32.totalorder %s15, 1
      %s378 = scalar_select %p377, %s15, 1
      %s379 = smul.addr %s378, 8
      %s380 = scalar_lea.vmem %s4, %s379
      // Predicated region
      $region37: #{tpu_custom_call.1} parent=35 // pred_check
        %p381 = pneg %p122
      $region38: #{tpu_custom_call.1} parent=35 // pred_check_branch
        %383 = sbr.rel (%p381) target = $region40
      $region39: #{tpu_custom_call.1} parent=35 // pred_region
        _
      $region40: #{tpu_custom_call.1} parent=35 // pred_fallthru
        _
    $region36: #{tpu_custom_call.1} parent=5 // pred_fallthru
      _
    %p384 = scmp.le.s32.totalorder 2, %s10
    // Predicated region
    $region41: #{tpu_custom_call.1} parent=5 // pred_check
      %p385 = pneg %p384
    $region42: #{tpu_custom_call.1} parent=5 // pred_check_branch
      %387 = sbr.rel (%p385) target = $region44
    $region43: #{tpu_custom_call.1} parent=5 // pred_region
      %s388 = ssub.s32 %s10, 2
      // Predicated region
      $region45: #{tpu_custom_call.1} parent=43 // pred_check
        %p389 = pneg %p128
      $region46: #{tpu_custom_call.1} parent=43 // pred_check_branch
        %391 = sbr.rel (%p389) target = $region48
      $region47: #{tpu_custom_call.1} parent=43 // pred_region
        %p392 = scmp.lt.s32.totalorder %s16, 1
        %s393 = scalar_select %p392, %s16, 1
        %s394 = smul.addr %s393, 8
        %s395 = scalar_lea.vmem %s4, %s394
      $region48: #{tpu_custom_call.1} parent=43 // pred_fallthru
        _
    $region44: #{tpu_custom_call.1} parent=5 // pred_fallthru
      _
  $region6: #{tpu_custom_call.1} parent=0 // loop_footer
    %s14 = sadd.s32 1, %s10
  $region7: #{tpu_custom_call.1} parent=0 // loop_footer_branch
    %9 = sbr.rel target = $region3
  $region8: #{tpu_custom_call.1} parent=0 // loop_exit
    _

</llo_original>
